<compile_context>
chip_gen: v7x
topology: tpu7x:2x2x1
jax: 0.10.0
libtpu: 0.0.40
codegen_flags: <defaults>
</compile_context>

<pallas_src>
import jax
import jax.numpy as jnp
from jax.experimental import pallas as pl
from jax.experimental.pallas import tpu as pltpu

_MIB = 1 << 20


def _round_up(n: int, m: int) -> int:
    return ((n + m - 1) // m) * m


def _lane_align(n: int) -> int:
    # v6e/v7x MXUs are 256x256: use 256-aligned K/N once the dim is big enough
    # to fill them; 128 otherwise (already optimal on v5e, avoids waste on
    # tiny dims). TODO(synk): also gate on chip generation (128 is enough on v5e).
    return _round_up(n, 256) if n >= 256 else _round_up(n, 128)


def _physical_vmem_bytes() -> int:
    try:
        return int(pltpu.get_tpu_info().vmem_capacity_bytes)
    except Exception:
        return 64 * _MIB  # conservative: v7x per-TensorCore VMEM


def _vmem_bytes(TB, Fp, Hp, Lp, weight_buffers=1):
    """Rough VMEM budget: weights (+biases), double-buffered x/out tiles, f32 temps."""
    weights = weight_buffers * (Fp * Hp * 2 + Hp * Lp * 2 + 8 * Hp * 4 + 8 * Lp * 4)
    x_io = 2 * TB * Fp * 2          # double-buffered bf16 input tiles
    o_io = 2 * TB * Lp * 4          # double-buffered f32 output tiles
    temps = 3 * TB * max(Hp, Lp) * 4  # h / logits / exp f32 intermediates
    return weights + x_io + o_io + temps


def _choose_tb(B: int, tb_cap: int, vmem_budget: int, Fp: int, Hp: int, Lp: int) -> int:
    if B <= 128:
        # Tiny batch: only sublane alignment needed (16 covers bf16 input and
        # f32 output tiles). No point splitting 8 rows across TensorCores.
        TB = _round_up(B, 16)
    else:
        cands = [c for c in (1024, 512, 384, 256, 128) if c <= tb_cap] or [128]
        # Minimize padded-batch overshoot; prefer the larger tile on ties.
        TB = min(cands, key=lambda c: (_round_up(B, c) - B, -c))
        # Keep >= 2 grid steps so v7x can shard the "parallel" batch axis
        # across its two TensorCores (harmless on 1-TC v5e/v6e).
        while _round_up(B, TB) // TB < 2 and TB > 128:
            TB = max(128, _round_up(TB // 2, 16))
    # Shrink until the resident-weight + tile budget fits the per-chip VMEM.
    while _vmem_bytes(TB, Fp, Hp, Lp) > vmem_budget and TB > 16:
        TB = max(16, _round_up(TB // 2, 16))
    return TB


def mlp_kernel(x_ref, w1_ref, b1_ref, w2_ref, b2_ref, o_ref):
    # fc1: [TB, Fp](bf16) @ [Fp, Hp](bf16) -> f32 acc, + bias (f32).
    h = jnp.dot(x_ref[...], w1_ref[...],
                preferred_element_type=jnp.float32) + b1_ref[...]
    # fc2: cast the intermediate back to bf16 for the MXU, accumulate in f32.
    # Padded label columns already carry -1e30 via the padded bias.
    logits = jnp.dot(h.astype(jnp.bfloat16), w2_ref[...],
                     preferred_element_type=jnp.float32) + b2_ref[...]
    # Numerically-stable softmax over the label (lane) dim. The row max is a
    # real column, so exp(0)=1 is in the sum and denom >= 1 (keeps the
    # NR-corrected approx reciprocal within 1e-5). Padded cols give exp(-1e30)=0.
    m = jnp.max(logits, axis=-1, keepdims=True)
    e = jnp.exp(logits - m)
    denom = jnp.sum(e, axis=-1, keepdims=True)
    r = pl.reciprocal(denom, approx=True)   # EUP slot
    r = r * (2.0 - denom * r)               # one Newton-Raphson step
    o_ref[...] = (e * r).astype(o_ref.dtype)


def _mlp_call(TB, Bp, Fp, Hp, Lp, vmem_limit_bytes, single_buffer_weights):
    # Constant-index_map operands never change across the grid: request a
    # single VMEM buffer for them (halves resident-weight VMEM).
    resident = dict(pipeline_mode=pl.Buffered(1)) if single_buffer_weights else {}
    return pl.pallas_call(
        mlp_kernel,
        out_shape=jax.ShapeDtypeStruct((Bp, Lp), jnp.float32),
        grid=(Bp // TB,),
        in_specs=[
            pl.BlockSpec((TB, Fp), lambda i: (i, 0)),               # x: streamed
            pl.BlockSpec((Fp, Hp), lambda i: (0, 0), **resident),   # w1: resident
            pl.BlockSpec((1, Hp), lambda i: (0, 0), **resident),    # b1: resident
            pl.BlockSpec((Hp, Lp), lambda i: (0, 0), **resident),   # w2: resident
            pl.BlockSpec((1, Lp), lambda i: (0, 0), **resident),    # b2: resident
        ],
        out_specs=pl.BlockSpec((TB, Lp), lambda i: (i, 0)),
        compiler_params=pltpu.CompilerParams(
            dimension_semantics=("parallel",),
            vmem_limit_bytes=vmem_limit_bytes,
        ),
    )


def prepare_mlp_params(w1, b1, w2, b2):
    """Pad + bf16-cast the weights ONCE (hoisted out of the per-call path)."""
    F, H = w1.shape
    L = w2.shape[1]
    Fp, Hp, Lp = _lane_align(F), _lane_align(H), _lane_align(L)
    w1_p = jnp.pad(w1, ((0, Fp - F), (0, Hp - H))).astype(jnp.bfloat16)
    w2_p = jnp.pad(w2, ((0, Hp - H), (0, Lp - L))).astype(jnp.bfloat16)
    b1_p = jnp.pad(jnp.reshape(b1, (1, H)).astype(jnp.float32),
                   ((0, 0), (0, Hp - H)))
    # Pad the fc2 bias with -1e30: since w2's padded columns are zero, padded
    # logits become exactly -1e30 and no in-kernel label mask is needed.
    # (Large finite, not -inf, to avoid NaN from (-inf) - (-inf).)
    b2_p = jnp.pad(jnp.reshape(b2, (1, L)).astype(jnp.float32),
                   ((0, 0), (0, Lp - L)), constant_values=-1e30)
    return dict(w1=w1_p, b1=b1_p, w2=w2_p, b2=b2_p,
                dims=(F, H, L), padded_dims=(Fp, Hp, Lp))


def mlp_forward_prepared(x, params, *, tb: int | None = None):
    """x: [B, F] float; params from prepare_mlp_params. Returns [B, L] f32 softmax."""
    F, H, L = params["dims"]
    Fp, Hp, Lp = params["padded_dims"]
    B = x.shape[0]
    assert x.shape[1] == F

    vmem_cap = _physical_vmem_bytes()
    vmem_budget = (vmem_cap * 3) // 4
    if tb is None:
        # 128-MiB-VMEM chips (v5e/v6e) can afford much larger batch tiles than
        # v7x's 64 MiB.
        tb = 1024 if vmem_cap >= 96 * _MIB else 256

    TB = _choose_tb(B, tb, vmem_budget, Fp, Hp, Lp)
    Bp = _round_up(B, TB)

    est = _vmem_bytes(TB, Fp, Hp, Lp, weight_buffers=1)
    vmem_limit = int(min(vmem_cap - 4 * _MIB, max(est + 8 * _MIB, 32 * _MIB)))
    # TODO(synk): if the estimate still exceeds the budget at TB=16 (very large
    # F/H/L, e.g. 8192x8192 weights), switch to a K-reduction grid over Fp/Hp
    # with an f32 accumulator scratch instead of fully-resident weights.

    x_p = jnp.pad(x, ((0, Bp - B), (0, Fp - F))).astype(jnp.bfloat16)

    out_p = None
    for single_buffer in (True, False):
        try:
            out_p = _mlp_call(TB, Bp, Fp, Hp, Lp, vmem_limit, single_buffer)(
                x_p, params["w1"], params["b1"], params["w2"], params["b2"])
            break
        except Exception:
            if not single_buffer:
                raise  # even the default-buffered path failed: surface the error
    # Padded batch rows / label columns are sliced off here — do not remove.
    return out_p[:B, :L]


def mlp_forward(x, w1, b1, w2, b2, *, tb: int | None = None):
    """Convenience wrapper: softmax(fc2(fc1(x))) as [B, L] float32."""
    return mlp_forward_prepared(x, prepare_mlp_params(w1, b1, w2, b2), tb=tb)


if __name__ == "__main__":
    # Small synthetic sizes implied by the module (the original loads num_labels
    # from a pickle; here they are in-script constants):
    #   num_features -> 32, num_hidden_nodes -> 64, num_labels -> 16, batch -> 8
    B, F, H, L = 8, 32, 64, 16

    key = jax.random.PRNGKey(0)
    kx, kw1, kb1, kw2, kb2 = jax.random.split(key, 5)

    x = jax.random.normal(kx, (B, F), dtype=jnp.float32)
    # Deterministic "Linear"-style init (uniform in +/- 1/sqrt(fan_in)), stored
    # pre-transposed as [in, out].
    w1 = jax.random.uniform(kw1, (F, H), minval=-1.0 / F**0.5, maxval=1.0 / F**0.5,
                            dtype=jnp.float32)
    b1 = jax.random.uniform(kb1, (1, H), minval=-1.0 / F**0.5, maxval=1.0 / F**0.5,
                            dtype=jnp.float32)
    w2 = jax.random.uniform(kw2, (H, L), minval=-1.0 / H**0.5, maxval=1.0 / H**0.5,
                            dtype=jnp.float32)
    b2 = jax.random.uniform(kb2, (1, L), minval=-1.0 / H**0.5, maxval=1.0 / H**0.5,
                            dtype=jnp.float32)

    # Weight prep (pad + bf16 cast) is hoisted and reusable across calls.
    params = prepare_mlp_params(w1, b1, w2, b2)
    out = mlp_forward_prepared(x, params)
    out = jax.block_until_ready(out)
    assert out.shape == (B, L)

    # Exact reference of the kernel's bf16-operand / f32-accumulate math.
    xb, w1b, w2b = (t.astype(jnp.bfloat16) for t in (x, w1, w2))
    h_ref = jnp.dot(xb, w1b, preferred_element_type=jnp.float32) + b1
    logits_ref = jnp.dot(h_ref.astype(jnp.bfloat16), w2b,
                         preferred_element_type=jnp.float32) + b2
    ref_bf16 = jax.nn.softmax(logits_ref, axis=-1)
    assert jnp.allclose(out, ref_bf16, atol=1e-5, rtol=1e-5)

    # Loose check against the pure-f32 module semantics (bf16 operand rounding).
    ref_f32 = jax.nn.softmax((x @ w1 + b1) @ w2 + b2, axis=-1)
    assert jnp.allclose(out, ref_f32, atol=3e-2)

    # Softmax rows sum to 1.
    assert jnp.allclose(jnp.sum(out, axis=-1), jnp.ones((B,)), atol=1e-5)

    print("KERNEL_OK")
</pallas_src>

<mosaic_0001>
module attributes {stable_mosaic.version = 11 : i64} {
  func.func @mlp_kernel(%arg0: i32, %arg1: memref<16x128xbf16, #tpu.memory_space<vmem>>, %arg2: memref<128x128xbf16, #tpu.memory_space<vmem>>, %arg3: memref<1x128xf32, #tpu.memory_space<vmem>>, %arg4: memref<128x128xbf16, #tpu.memory_space<vmem>>, %arg5: memref<1x128xf32, #tpu.memory_space<vmem>>, %arg6: memref<16x128xf32, #tpu.memory_space<vmem>>) attributes {dimension_semantics = [#tpu.dimension_semantics<parallel>], iteration_bounds = array<i64: 1>, scalar_prefetch = 0 : i64, scratch_operands = 0 : i64, tpu.core_type = #tpu.core_type<tc>, window_params = [{transform_indices = @transform_0, window_bounds = array<i64: 16, 128>}, {pipeline_mode = #tpu.pipeline_mode<synchronous>, transform_indices = @transform_1, window_bounds = array<i64: 128, 128>}, {pipeline_mode = #tpu.pipeline_mode<synchronous>, transform_indices = @transform_2, window_bounds = array<i64: 1, 128>}, {pipeline_mode = #tpu.pipeline_mode<synchronous>, transform_indices = @transform_3, window_bounds = array<i64: 128, 128>}, {pipeline_mode = #tpu.pipeline_mode<synchronous>, transform_indices = @transform_4, window_bounds = array<i64: 1, 128>}, {transform_indices = @transform_5, window_bounds = array<i64: 16, 128>}]} {
    %c0 = arith.constant 0 : index
    %c0_0 = arith.constant 0 : index
    %0 = vector.load %arg1[%c0, %c0_0] : memref<16x128xbf16, #tpu.memory_space<vmem>>, vector<16x128xbf16>
    %c0_1 = arith.constant 0 : index
    %c0_2 = arith.constant 0 : index
    %1 = vector.load %arg2[%c0_1, %c0_2] : memref<128x128xbf16, #tpu.memory_space<vmem>>, vector<128x128xbf16>
    %cst = arith.constant dense<0.000000e+00> : vector<16x128xf32>
    %2 = tpu.matmul %0, %1, %cst {dimension_numbers = #tpu.dot_dimension_numbers<[1], [0], [0], [1], [0, 0, 1, 1], [], []>} : vector<16x128xbf16>, vector<128x128xbf16>, vector<16x128xf32> -> vector<16x128xf32>
    %c0_3 = arith.constant 0 : index
    %c0_4 = arith.constant 0 : index
    %3 = vector.load %arg3[%c0_3, %c0_4] : memref<1x128xf32, #tpu.memory_space<vmem>>, vector<1x128xf32>
    %4 = vector.broadcast %3 : vector<1x128xf32> to vector<16x128xf32>
    %5 = arith.addf %2, %4 : vector<16x128xf32>
    %6 = arith.truncf %5 : vector<16x128xf32> to vector<16x128xbf16>
    %c0_5 = arith.constant 0 : index
    %c0_6 = arith.constant 0 : index
    %7 = vector.load %arg4[%c0_5, %c0_6] : memref<128x128xbf16, #tpu.memory_space<vmem>>, vector<128x128xbf16>
    %cst_7 = arith.constant dense<0.000000e+00> : vector<16x128xf32>
    %8 = tpu.matmul %6, %7, %cst_7 {dimension_numbers = #tpu.dot_dimension_numbers<[1], [0], [0], [1], [0, 0, 1, 1], [], []>} : vector<16x128xbf16>, vector<128x128xbf16>, vector<16x128xf32> -> vector<16x128xf32>
    %c0_8 = arith.constant 0 : index
    %c0_9 = arith.constant 0 : index
    %9 = vector.load %arg5[%c0_8, %c0_9] : memref<1x128xf32, #tpu.memory_space<vmem>>, vector<1x128xf32>
    %10 = vector.broadcast %9 : vector<1x128xf32> to vector<16x128xf32>
    %11 = arith.addf %8, %10 : vector<16x128xf32>
    %cst_10 = arith.constant dense<0xFF800000> : vector<16xf32>
    %12 = vector.multi_reduction <maximumf>, %11, %cst_10 [1] : vector<16x128xf32> to vector<16xf32>
    %13 = vector.shape_cast %12 : vector<16xf32> to vector<16x1xf32>
    %14 = vector.broadcast %13 : vector<16x1xf32> to vector<16x128xf32>
    %15 = arith.subf %11, %14 : vector<16x128xf32>
    %16 = math.exp %15 : vector<16x128xf32>
    %cst_11 = arith.constant dense<0.000000e+00> : vector<16xf32>
    %17 = vector.multi_reduction <add>, %16, %cst_11 [1] : vector<16x128xf32> to vector<16xf32>
    %18 = vector.shape_cast %17 : vector<16xf32> to vector<16x1xf32>
    %19 = tpu.reciprocal %18 {approx = true} : vector<16x1xf32> -> vector<16x1xf32>
    %20 = arith.mulf %18, %19 : vector<16x1xf32>
    %cst_12 = arith.constant 2.000000e+00 : f32
    %21 = vector.broadcast %cst_12 : f32 to vector<16x1xf32>
    %22 = arith.subf %21, %20 : vector<16x1xf32>
    %23 = arith.mulf %19, %22 : vector<16x1xf32>
    %24 = vector.broadcast %23 : vector<16x1xf32> to vector<16x128xf32>
    %25 = arith.mulf %16, %24 : vector<16x128xf32>
    %c0_13 = arith.constant 0 : index
    %c0_14 = arith.constant 0 : index
    %26 = vector.load %arg6[%c0_13, %c0_14] : memref<16x128xf32, #tpu.memory_space<vmem>>, vector<16x128xf32>
    tpu.vector_store %arg6[%c0_13, %c0_14], %25 {strides = array<i32>} : memref<16x128xf32, #tpu.memory_space<vmem>>, vector<16x128xf32>,
    return
  }
  func.func @transform_0(%arg0: i32) -> (i32, i32) {
    %c0_i32 = arith.constant 0 : i32
    %c0_i32_0 = arith.constant 0 : i32
    return %arg0, %c0_i32 : i32, i32
  }
  func.func @transform_1(%arg0: i32) -> (i32, i32) {
    %c0_i32 = arith.constant 0 : i32
    %c0_i32_0 = arith.constant 0 : i32
    %c0_i32_1 = arith.constant 0 : i32
    return %c0_i32, %c0_i32_0 : i32, i32
  }
  func.func @transform_2(%arg0: i32) -> (i32, i32) {
    %c0_i32 = arith.constant 0 : i32
    %c0_i32_0 = arith.constant 0 : i32
    %c0_i32_1 = arith.constant 0 : i32
    return %c0_i32, %c0_i32_0 : i32, i32
  }
  func.func @transform_3(%arg0: i32) -> (i32, i32) {
    %c0_i32 = arith.constant 0 : i32
    %c0_i32_0 = arith.constant 0 : i32
    %c0_i32_1 = arith.constant 0 : i32
    return %c0_i32, %c0_i32_0 : i32, i32
  }
  func.func @transform_4(%arg0: i32) -> (i32, i32) {
    %c0_i32 = arith.constant 0 : i32
    %c0_i32_0 = arith.constant 0 : i32
    %c0_i32_1 = arith.constant 0 : i32
    return %c0_i32, %c0_i32_0 : i32, i32
  }
  func.func @transform_5(%arg0: i32) -> (i32, i32) {
    %c0_i32 = arith.constant 0 : i32
    %c0_i32_0 = arith.constant 0 : i32
    return %arg0, %c0_i32 : i32, i32
  }
}

module attributes {stable_mosaic.version = 11 : i64} {
  func.func @mlp_kernel(%arg0: i32, %arg1: memref<16x128xbf16, #tpu.memory_space<vmem>>, %arg2: memref<128x128xbf16, #tpu.memory_space<vmem>>, %arg3: memref<1x128xf32, #tpu.memory_space<vmem>>, %arg4: memref<128x128xbf16, #tpu.memory_space<vmem>>, %arg5: memref<1x128xf32, #tpu.memory_space<vmem>>, %arg6: memref<16x128xf32, #tpu.memory_space<vmem>>) attributes {dimension_semantics = [#tpu.dimension_semantics<parallel>], iteration_bounds = array<i64: 1>, scalar_prefetch = 0 : i64, scratch_operands = 0 : i64, tpu.core_type = #tpu.core_type<tc>, window_params = [{transform_indices = @transform_0, window_bounds = array<i64: 16, 128>}, {pipeline_mode = #tpu.pipeline_mode<synchronous>, transform_indices = @transform_1, window_bounds = array<i64: 128, 128>}, {pipeline_mode = #tpu.pipeline_mode<synchronous>, transform_indices = @transform_2, window_bounds = array<i64: 1, 128>}, {pipeline_mode = #tpu.pipeline_mode<synchronous>, transform_indices = @transform_3, window_bounds = array<i64: 128, 128>}, {pipeline_mode = #tpu.pipeline_mode<synchronous>, transform_indices = @transform_4, window_bounds = array<i64: 1, 128>}, {transform_indices = @transform_5, window_bounds = array<i64: 16, 128>}]} {
    %c0 = arith.constant 0 : index
    %c0_0 = arith.constant 0 : index
    %0 = vector.load %arg1[%c0, %c0_0] : memref<16x128xbf16, #tpu.memory_space<vmem>>, vector<16x128xbf16>
    %c0_1 = arith.constant 0 : index
    %c0_2 = arith.constant 0 : index
    %1 = vector.load %arg2[%c0_1, %c0_2] : memref<128x128xbf16, #tpu.memory_space<vmem>>, vector<128x128xbf16>
    %cst = arith.constant dense<0.000000e+00> : vector<16x128xf32>
    %2 = tpu.matmul %0, %1, %cst {dimension_numbers = #tpu.dot_dimension_numbers<[1], [0], [0], [1], [0, 0, 1, 1], [], []>} : vector<16x128xbf16>, vector<128x128xbf16>, vector<16x128xf32> -> vector<16x128xf32>
    %c0_3 = arith.constant 0 : index
    %c0_4 = arith.constant 0 : index
    %3 = vector.load %arg3[%c0_3, %c0_4] : memref<1x128xf32, #tpu.memory_space<vmem>>, vector<1x128xf32>
    %4 = vector.broadcast %3 : vector<1x128xf32> to vector<16x128xf32>
    %5 = arith.addf %2, %4 : vector<16x128xf32>
    %6 = arith.truncf %5 : vector<16x128xf32> to vector<16x128xbf16>
    %c0_5 = arith.constant 0 : index
    %c0_6 = arith.constant 0 : index
    %7 = vector.load %arg4[%c0_5, %c0_6] : memref<128x128xbf16, #tpu.memory_space<vmem>>, vector<128x128xbf16>
    %cst_7 = arith.constant dense<0.000000e+00> : vector<16x128xf32>
    %8 = tpu.matmul %6, %7, %cst_7 {dimension_numbers = #tpu.dot_dimension_numbers<[1], [0], [0], [1], [0, 0, 1, 1], [], []>} : vector<16x128xbf16>, vector<128x128xbf16>, vector<16x128xf32> -> vector<16x128xf32>
    %c0_8 = arith.constant 0 : index
    %c0_9 = arith.constant 0 : index
    %9 = vector.load %arg5[%c0_8, %c0_9] : memref<1x128xf32, #tpu.memory_space<vmem>>, vector<1x128xf32>
    %10 = vector.broadcast %9 : vector<1x128xf32> to vector<16x128xf32>
    %11 = arith.addf %8, %10 : vector<16x128xf32>
    %cst_10 = arith.constant dense<0xFF800000> : vector<16xf32>
    %12 = vector.multi_reduction <maximumf>, %11, %cst_10 [1] : vector<16x128xf32> to vector<16xf32>
    %13 = vector.shape_cast %12 : vector<16xf32> to vector<16x1xf32>
    %14 = vector.broadcast %13 : vector<16x1xf32> to vector<16x128xf32>
    %15 = arith.subf %11, %14 : vector<16x128xf32>
    %16 = math.exp %15 : vector<16x128xf32>
    %cst_11 = arith.constant dense<0.000000e+00> : vector<16xf32>
    %17 = vector.multi_reduction <add>, %16, %cst_11 [1] : vector<16x128xf32> to vector<16xf32>
    %18 = vector.shape_cast %17 : vector<16xf32> to vector<16x1xf32>
    %19 = tpu.reciprocal %18 {approx = true} : vector<16x1xf32> -> vector<16x1xf32>
    %20 = arith.mulf %18, %19 : vector<16x1xf32>
    %cst_12 = arith.constant 2.000000e+00 : f32
    %21 = vector.broadcast %cst_12 : f32 to vector<16x1xf32>
    %22 = arith.subf %21, %20 : vector<16x1xf32>
    %23 = arith.mulf %19, %22 : vector<16x1xf32>
    %24 = vector.broadcast %23 : vector<16x1xf32> to vector<16x128xf32>
    %25 = arith.mulf %16, %24 : vector<16x128xf32>
    %c0_13 = arith.constant 0 : index
    %c0_14 = arith.constant 0 : index
    %26 = vector.load %arg6[%c0_13, %c0_14] : memref<16x128xf32, #tpu.memory_space<vmem>>, vector<16x128xf32>
    tpu.vector_store %arg6[%c0_13, %c0_14], %25 {strides = array<i32>} : memref<16x128xf32, #tpu.memory_space<vmem>>, vector<16x128xf32>,
    return
  }
  func.func @transform_0(%arg0: i32) -> (i32, i32) {
    %c0_i32 = arith.constant 0 : i32
    %c0_i32_0 = arith.constant 0 : i32
    return %arg0, %c0_i32 : i32, i32
  }
  func.func @transform_1(%arg0: i32) -> (i32, i32) {
    %c0_i32 = arith.constant 0 : i32
    %c0_i32_0 = arith.constant 0 : i32
    %c0_i32_1 = arith.constant 0 : i32
    return %c0_i32, %c0_i32_0 : i32, i32
  }
  func.func @transform_2(%arg0: i32) -> (i32, i32) {
    %c0_i32 = arith.constant 0 : i32
    %c0_i32_0 = arith.constant 0 : i32
    %c0_i32_1 = arith.constant 0 : i32
    return %c0_i32, %c0_i32_0 : i32, i32
  }
  func.func @transform_3(%arg0: i32) -> (i32, i32) {
    %c0_i32 = arith.constant 0 : i32
    %c0_i32_0 = arith.constant 0 : i32
    %c0_i32_1 = arith.constant 0 : i32
    return %c0_i32, %c0_i32_0 : i32, i32
  }
  func.func @transform_4(%arg0: i32) -> (i32, i32) {
    %c0_i32 = arith.constant 0 : i32
    %c0_i32_0 = arith.constant 0 : i32
    %c0_i32_1 = arith.constant 0 : i32
    return %c0_i32, %c0_i32_0 : i32, i32
  }
  func.func @transform_5(%arg0: i32) -> (i32, i32) {
    %c0_i32 = arith.constant 0 : i32
    %c0_i32_0 = arith.constant 0 : i32
    return %arg0, %c0_i32 : i32, i32
  }
}

</mosaic_0001>

<llo_original>
// kernel: tpu_custom_call.1
$region0: #{tpu_custom_call.1}
  #allocation0 [shape = 'u32[]', space=smem, size = 0x4, offset = 0x4, fixed_abs, tag = 'smem constant byte address 0x4 - core index']
  #allocation1 [shape = 'u32[144,128]{1,0:T(1,128)}', space=vmem, size = 0x12000, scoped, tag = 'internal scratch']
  %s0 = inlined_call_operand.hbm [shape: bf16[16,128], index: 0, kind: input, shape index: {}]
  %s1 = inlined_call_operand.hbm [shape: bf16[128,128], index: 1, kind: input, shape index: {}]
  %s2 = inlined_call_operand.vmem [shape: f32[1,128], index: 2, kind: input, shape index: {}]
  %s3 = inlined_call_operand.hbm [shape: bf16[128,128], index: 3, kind: input, shape index: {}]
  %s4 = inlined_call_operand.vmem [shape: f32[1,128], index: 4, kind: input, shape index: {}]
  %s5 = inlined_call_operand.hbm [shape: f32[16,128], index: 5, kind: output, shape index: {}]
  %s6 = sld [smem:[#allocation0]]
  $region42: #{tpu_custom_call.1} parent=0
    _
  %s8 = ssub.s32 1, %s6
  %s9 = scalar_select 0, %s8, %s6
  $region1: #{tpu_custom_call.1} parent=0
    #allocation2 [shape = 'u8[4096]{0}', space=vmem, size = 0x1000, scoped, tag = 'input window, operand 0, single buffered']
    #allocation3 [shape = 's32[1]{0}', space=sflag, size = 0x4, scoped, tag = 'scoped memory for tpu_custom_call.1']
    #allocation4 [shape = 's32[1]{0}', space=sflag, size = 0x4, scoped, tag = 'scoped memory for tpu_custom_call.1']
    #allocation5 [shape = 'u8[32768]{0}', space=vmem, size = 0x8000, scoped, tag = 'input window, operand 1, single buffered']
    #allocation6 [shape = 's32[1]{0}', space=sflag, size = 0x4, scoped, tag = 'scoped memory for tpu_custom_call.1']
    #allocation7 [shape = 'u8[32768]{0}', space=vmem, size = 0x8000, scoped, tag = 'input window, operand 3, single buffered']
    #allocation8 [shape = 'u8[8192]{0}', space=vmem, size = 0x2000, scoped, tag = 'output window, operand 0, single buffered']
    %10 = vsyncpa [#allocation3], 0
    %11 = vsyncpa [#allocation6], 0
    %12 = vsyncpa [#allocation4], 0
    // Predicated region
    $region2: #{tpu_custom_call.1} parent=1 // pred_check
      _
    $region3: #{tpu_custom_call.1} parent=1 // pred_check_branch
      %14 = sbr.rel (0) target = $region5
    $region4: #{tpu_custom_call.1} parent=1 // pred_region
      %s16 = ssub.s32 128, 128
      %17 = vsyncadd [#allocation3], %s16
      %s18 = sshll.u32 [#allocation2], 4
      %s19 = int_to_ptr.vmem [resolvable:$true] %s18
      %24 = dma.hbm_to_vmem [thread:$0]  %s0, 128, %s19, [#allocation3], 64, 64, 4
    $region5: #{tpu_custom_call.1} parent=1 // pred_fallthru
      _
    // Predicated region
    $region6: #{tpu_custom_call.1} parent=1 // pred_check
      _
    $region7: #{tpu_custom_call.1} parent=1 // pred_check_branch
      %26 = sbr.rel (0) target = $region9
    $region8: #{tpu_custom_call.1} parent=1 // pred_region
      %s28 = ssub.s32 1024, 1024
      %29 = vsyncadd [#allocation6], %s28
      %s30 = sshll.u32 [#allocation5], 4
      %s31 = int_to_ptr.vmem [resolvable:$true] %s30
      %36 = dma.hbm_to_vmem [thread:$0]  %s1, 1024, %s31, [#allocation6], 64, 64, 4
    $region9: #{tpu_custom_call.1} parent=1 // pred_fallthru
      _
    // Predicated region
    $region10: #{tpu_custom_call.1} parent=1 // pred_check
      _
    $region11: #{tpu_custom_call.1} parent=1 // pred_check_branch
      %38 = sbr.rel (0) target = $region13
    $region12: #{tpu_custom_call.1} parent=1 // pred_region
      _
    $region13: #{tpu_custom_call.1} parent=1 // pred_fallthru
      _
    // Predicated region
    $region14: #{tpu_custom_call.1} parent=1 // pred_check
      _
    $region15: #{tpu_custom_call.1} parent=1 // pred_check_branch
      %40 = sbr.rel (0) target = $region17
    $region16: #{tpu_custom_call.1} parent=1 // pred_region
      %s42 = ssub.s32 1024, 1024
      %43 = vsyncadd [#allocation6], %s42
      %s44 = sshll.u32 [#allocation7], 4
      %s45 = int_to_ptr.vmem [resolvable:$true] %s44
      %50 = dma.hbm_to_vmem [thread:$0]  %s3, 1024, %s45, [#allocation6], 64, 64, 4
    $region17: #{tpu_custom_call.1} parent=1 // pred_fallthru
      _
    // Predicated region
    $region18: #{tpu_custom_call.1} parent=1 // pred_check
      _
    $region19: #{tpu_custom_call.1} parent=1 // pred_check_branch
      %52 = sbr.rel (0) target = $region21
    $region20: #{tpu_custom_call.1} parent=1 // pred_region
      _
    $region21: #{tpu_custom_call.1} parent=1 // pred_fallthru
      _
    // Predicated region
    $region22: #{tpu_custom_call.1} parent=1 // pred_check
      _
    $region23: #{tpu_custom_call.1} parent=1 // pred_check_branch
      %54 = sbr.rel (0) target = $region25
    $region24: #{tpu_custom_call.1} parent=1 // pred_region
      %55 = dma.done [#allocation3], 128
    $region25: #{tpu_custom_call.1} parent=1 // pred_fallthru
      _
    // Predicated region
    $region26: #{tpu_custom_call.1} parent=1 // pred_check
      _
    $region27: #{tpu_custom_call.1} parent=1 // pred_check_branch
      %57 = sbr.rel (0) target = $region29
    $region28: #{tpu_custom_call.1} parent=1 // pred_region
      %58 = dma.done [#allocation6], 1024
    $region29: #{tpu_custom_call.1} parent=1 // pred_fallthru
      _
    // Predicated region
    $region30: #{tpu_custom_call.1} parent=1 // pred_check
      _
    $region31: #{tpu_custom_call.1} parent=1 // pred_check_branch
      %60 = sbr.rel (0) target = $region33
    $region32: #{tpu_custom_call.1} parent=1 // pred_region
      %61 = dma.done [#allocation6], 1024
    $region33: #{tpu_custom_call.1} parent=1 // pred_fallthru
      _
    %v63 = vld [vmem:[#allocation2] sm:$0xf]
    %v64 = vld [vmem:[#allocation2 + $0x4] sm:$0xf]
    %v65 = vld [vmem:[#allocation5] sm:$0xf]
    %v66 = vld [vmem:[#allocation5 + $0x4] sm:$0xf]
    %v67 = vld [vmem:[#allocation5 + $0x8] sm:$0xf]
    %v68 = vld [vmem:[#allocation5 + $0xc] sm:$0xf]
    %v69 = vld [vmem:[#allocation5 + $0x10] sm:$0xf]
    %v70 = vld [vmem:[#allocation5 + $0x14] sm:$0xf]
    %v71 = vld [vmem:[#allocation5 + $0x18] sm:$0xf]
    %v72 = vld [vmem:[#allocation5 + $0x1c] sm:$0xf]
    %v73 = vld [vmem:[#allocation5 + $0x20] sm:$0xf]
    %v74 = vld [vmem:[#allocation5 + $0x24] sm:$0xf]
    %v75 = vld [vmem:[#allocation5 + $0x28] sm:$0xf]
    %v76 = vld [vmem:[#allocation5 + $0x2c] sm:$0xf]
    %v77 = vld [vmem:[#allocation5 + $0x30] sm:$0xf]
    %v78 = vld [vmem:[#allocation5 + $0x34] sm:$0xf]
    %v79 = vld [vmem:[#allocation5 + $0x38] sm:$0xf]
    %v80 = vld [vmem:[#allocation5 + $0x3c] sm:$0xf]
    %v81 = vld [vmem:[%s2] sm:$0x1]
    %v83 = vlaneseq
    %v84 = vshrl.u32 %v83, 7
    %v85 = vsub.s32 0, %v84
    %v86 = vrot.slane %v81, %v85
    %v90 = vunpack.c.l.b16 %v63
    %v91 = vunpack.c.l.b16 %v64
    %v92 = vpack.c.b16 %v91, %v90
    %v110 = vunpack.c.l.b16 %v65
    %v111 = vunpack.c.l.b16 %v66
    %v112 = vunpack.c.l.b16 %v67
    %v113 = vunpack.c.l.b16 %v68
    %v114 = vunpack.c.l.b16 %v69
    %v115 = vunpack.c.l.b16 %v70
    %v116 = vunpack.c.l.b16 %v71
    %v117 = vunpack.c.l.b16 %v72
    %v118 = vunpack.c.l.b16 %v73
    %v119 = vunpack.c.l.b16 %v74
    %v120 = vunpack.c.l.b16 %v75
    %v121 = vunpack.c.l.b16 %v76
    %v122 = vunpack.c.l.b16 %v77
    %v123 = vunpack.c.l.b16 %v78
    %v124 = vunpack.c.l.b16 %v79
    %v125 = vunpack.c.l.b16 %v80
    %v126 = vpack.c.b16 %v111, %v110
    %v127 = vpack.c.b16 %v113, %v112
    %v128 = vpack.c.b16 %v115, %v114
    %v129 = vpack.c.b16 %v117, %v116
    %v130 = vpack.c.b16 %v119, %v118
    %v131 = vpack.c.b16 %v121, %v120
    %v132 = vpack.c.b16 %v123, %v122
    %v133 = vpack.c.b16 %v125, %v124
    %142 = vmatprep.subr.bf16.mxu0 0
    %143 = vmatpush1.bf16.msra.mxu0 %v126
    %144 = vmatprep.subr.bf16.mxu0 0
    %145 = vmatpush1.bf16.msra.mxu0 %v127
    %146 = vmatprep.subr.bf16.mxu0 0
    %147 = vmatpush1.bf16.msra.mxu0 %v128
    %148 = vmatprep.subr.bf16.mxu0 0
    %149 = vmatpush1.bf16.msra.mxu0 %v129
    %150 = vmatprep.subr.bf16.mxu0 0
    %151 = vmatpush1.bf16.msra.mxu0 %v130
    %152 = vmatprep.subr.bf16.mxu0 0
    %153 = vmatpush1.bf16.msra.mxu0 %v131
    %154 = vmatprep.subr.bf16.mxu0 0
    %155 = vmatpush1.bf16.msra.mxu0 %v132
    %156 = vmatprep.subr.bf16.mxu0 0
    %157 = vmatpush1.bf16.msra.mxu0 %v133
    %158 = vmatprep.subr.bf16.mxu0 0
    %159 = vmatpush1.bf16.msra.mxu0 0
    %160 = vmatprep.subr.bf16.mxu0 0
    %161 = vmatpush1.bf16.msra.mxu0 0
    %162 = vmatprep.subr.bf16.mxu0 0
    %163 = vmatpush1.bf16.msra.mxu0 0
    %164 = vmatprep.subr.bf16.mxu0 0
    %165 = vmatpush1.bf16.msra.mxu0 0
    %166 = vmatprep.subr.bf16.mxu0 0
    %167 = vmatpush1.bf16.msra.mxu0 0
    %168 = vmatprep.subr.bf16.mxu0 0
    %169 = vmatpush1.bf16.msra.mxu0 0
    %170 = vmatprep.subr.bf16.mxu0 0
    %171 = vmatpush1.bf16.msra.mxu0 0
    %172 = vmatprep.subr.bf16.mxu0 0
    %173 = vmatpush1.bf16.msra.mxu0 0
    %174 = vmatprep.mubr.bf16.mxu0 0
    %175 = vmatmul.mubr.bf16.gmra.mrb[0].mxu0 %v92
    %v176 = vpop.f32.mrb[0].mxu0
    %v177 = vadd.f32 %v86, %v176
    %v178 = vpop.f32.mrb[0].mxu0
    %v179 = vpop.f32.mrb[0].mxu0
    %v180 = vadd.f32 %v86, %v179
    %v181 = vpop.f32.mrb[0].mxu0
    %182 = vdwg.mxu0
    %v183 = vpack.c.bf16 %v180, %v177
    %v184 = vld [vmem:[#allocation7] sm:$0xf]
    %v185 = vld [vmem:[#allocation7 + $0x4] sm:$0xf]
    %v186 = vld [vmem:[#allocation7 + $0x8] sm:$0xf]
    %v187 = vld [vmem:[#allocation7 + $0xc] sm:$0xf]
    %v188 = vld [vmem:[#allocation7 + $0x10] sm:$0xf]
    %v189 = vld [vmem:[#allocation7 + $0x14] sm:$0xf]
    %v190 = vld [vmem:[#allocation7 + $0x18] sm:$0xf]
    %v191 = vld [vmem:[#allocation7 + $0x1c] sm:$0xf]
    %v192 = vld [vmem:[#allocation7 + $0x20] sm:$0xf]
    %v193 = vld [vmem:[#allocation7 + $0x24] sm:$0xf]
    %v194 = vld [vmem:[#allocation7 + $0x28] sm:$0xf]
    %v195 = vld [vmem:[#allocation7 + $0x2c] sm:$0xf]
    %v196 = vld [vmem:[#allocation7 + $0x30] sm:$0xf]
    %v197 = vld [vmem:[#allocation7 + $0x34] sm:$0xf]
    %v198 = vld [vmem:[#allocation7 + $0x38] sm:$0xf]
    %v199 = vld [vmem:[#allocation7 + $0x3c] sm:$0xf]
    %v200 = vld [vmem:[%s4] sm:$0x1]
    %v202 = vlaneseq
    %v203 = vshrl.u32 %v202, 7
    %v204 = vsub.s32 0, %v203
    %v205 = vrot.slane %v200, %v204
    %v223 = vunpack.c.l.b16 %v184
    %v224 = vunpack.c.l.b16 %v185
    %v225 = vunpack.c.l.b16 %v186
    %v226 = vunpack.c.l.b16 %v187
    %v227 = vunpack.c.l.b16 %v188
    %v228 = vunpack.c.l.b16 %v189
    %v229 = vunpack.c.l.b16 %v190
    %v230 = vunpack.c.l.b16 %v191
    %v231 = vunpack.c.l.b16 %v192
    %v232 = vunpack.c.l.b16 %v193
    %v233 = vunpack.c.l.b16 %v194
    %v234 = vunpack.c.l.b16 %v195
    %v235 = vunpack.c.l.b16 %v196
    %v236 = vunpack.c.l.b16 %v197
    %v237 = vunpack.c.l.b16 %v198
    %v238 = vunpack.c.l.b16 %v199
    %v239 = vpack.c.b16 %v224, %v223
    %v240 = vpack.c.b16 %v226, %v225
    %v241 = vpack.c.b16 %v228, %v227
    %v242 = vpack.c.b16 %v230, %v229
    %v243 = vpack.c.b16 %v232, %v231
    %v244 = vpack.c.b16 %v234, %v233
    %v245 = vpack.c.b16 %v236, %v235
    %v246 = vpack.c.b16 %v238, %v237
    %255 = vmatprep.subr.bf16.mxu0 0
    %256 = vmatpush1.bf16.msra.mxu0 %v239
    %257 = vmatprep.subr.bf16.mxu0 0
    %258 = vmatpush1.bf16.msra.mxu0 %v240
    %259 = vmatprep.subr.bf16.mxu0 0
    %260 = vmatpush1.bf16.msra.mxu0 %v241
    %261 = vmatprep.subr.bf16.mxu0 0
    %262 = vmatpush1.bf16.msra.mxu0 %v242
    %263 = vmatprep.subr.bf16.mxu0 0
    %264 = vmatpush1.bf16.msra.mxu0 %v243
    %265 = vmatprep.subr.bf16.mxu0 0
    %266 = vmatpush1.bf16.msra.mxu0 %v244
    %267 = vmatprep.subr.bf16.mxu0 0
    %268 = vmatpush1.bf16.msra.mxu0 %v245
    %269 = vmatprep.subr.bf16.mxu0 0
    %270 = vmatpush1.bf16.msra.mxu0 %v246
    %271 = vmatprep.subr.bf16.mxu0 0
    %272 = vmatpush1.bf16.msra.mxu0 0
    %273 = vmatprep.subr.bf16.mxu0 0
    %274 = vmatpush1.bf16.msra.mxu0 0
    %275 = vmatprep.subr.bf16.mxu0 0
    %276 = vmatpush1.bf16.msra.mxu0 0
    %277 = vmatprep.subr.bf16.mxu0 0
    %278 = vmatpush1.bf16.msra.mxu0 0
    %279 = vmatprep.subr.bf16.mxu0 0
    %280 = vmatpush1.bf16.msra.mxu0 0
    %281 = vmatprep.subr.bf16.mxu0 0
    %282 = vmatpush1.bf16.msra.mxu0 0
    %283 = vmatprep.subr.bf16.mxu0 0
    %284 = vmatpush1.bf16.msra.mxu0 0
    %285 = vmatprep.subr.bf16.mxu0 0
    %286 = vmatpush1.bf16.msra.mxu0 0
    %287 = vmatprep.mubr.bf16.mxu0 0
    %288 = vmatmul.mubr.bf16.gmra.mrb[0].mxu0 %v183
    %v289 = vpop.f32.mrb[0].mxu0
    %v290 = vadd.f32 %v205, %v289
    %v291 = vpop.f32.mrb[0].mxu0
    %v292 = vpop.f32.mrb[0].mxu0
    %v293 = vadd.f32 %v205, %v292
    %v294 = vpop.f32.mrb[0].mxu0
    %295 = vdwg.mxu0
    %296 = vmax.xlane.f32.xlu0 %v290
    %v297 = vpop.xlane.xlu0 %296
    %298 = vmax.xlane.f32.xlu0 %v293
    %v299 = vpop.xlane.xlu0 %298
    %v300 = vsub.f32 %v290, %v297
    %v301 = vsub.f32 %v293, %v299
    %v302 = vmul.f32 %v300, 1.442695
    %v303 = vpow.pop %v302
    %v304 = vmul.f32 %v301, 1.442695
    %v305 = vpow.pop %v304
    %306 = vadd.xlane.f32.xlu0 %v303
    %v307 = vpop.xlane.xlu0 %306
    %308 = vadd.xlane.f32.xlu0 %v305
    %v309 = vpop.xlane.xlu0 %308
    %v310 = vrcp.pop %v307
    %v311 = vrcp.pop %v309
    %v312 = vmul.f32 %v307, %v310
    %v313 = vmul.f32 %v309, %v311
    %v314 = vsub.f32 2.0, %v312
    %v315 = vsub.f32 2.0, %v313
    %v316 = vmul.f32 %v310, %v314
    %v317 = vmul.f32 %v311, %v315
    %v318 = vmul.f32 %v303, %v316
    %v319 = vmul.f32 %v305, %v317
    %320 = vst [vmem:[#allocation8] sm:$0xff] %v318
    %321 = vst [vmem:[#allocation8 + $0x8] sm:$0xff] %v319
    // Predicated region
    $region34: #{tpu_custom_call.1} parent=1 // pred_check
      _
    $region35: #{tpu_custom_call.1} parent=1 // pred_check_branch
      %323 = sbr.rel (0) target = $region37
    $region36: #{tpu_custom_call.1} parent=1 // pred_region
      %s325 = ssub.s32 256, 256
      %326 = vsyncadd [#allocation4], %s325
      %s327 = sshll.u32 [#allocation8], 4
      %s328 = int_to_ptr.vmem [resolvable:$true] %s327
      %333 = dma.vmem_to_hbm [thread:$0]  %s328, 256, %s5, [#allocation4], 128, 128, 8
    $region37: #{tpu_custom_call.1} parent=1 // pred_fallthru
      _
    // Predicated region
    $region38: #{tpu_custom_call.1} parent=1 // pred_check
      _
    $region39: #{tpu_custom_call.1} parent=1 // pred_check_branch
      %335 = sbr.rel (0) target = $region41
    $region40: #{tpu_custom_call.1} parent=1 // pred_region
      %336 = dma.done [#allocation4], 256
    $region41: #{tpu_custom_call.1} parent=1 // pred_fallthru
      _
    %337 = vsyncpa [#allocation3], 1
    %338 = vsyncpa [#allocation6], 1
    %339 = vsyncpa [#allocation4], 1

// kernel: tpu_custom_call.1
$region0: #{tpu_custom_call.1}
  #allocation0 [shape = 'u32[]', space=smem, size = 0x4, offset = 0x4, fixed_abs, tag = 'smem constant byte address 0x4 - core index']
  #allocation1 [shape = 'u32[144,128]{1,0:T(1,128)}', space=vmem, size = 0x12000, scoped, tag = 'internal scratch']
  %s0 = inlined_call_operand.hbm [shape: bf16[16,128], index: 0, kind: input, shape index: {}]
  %s1 = inlined_call_operand.hbm [shape: bf16[128,128], index: 1, kind: input, shape index: {}]
  %s2 = inlined_call_operand.vmem [shape: f32[1,128], index: 2, kind: input, shape index: {}]
  %s3 = inlined_call_operand.hbm [shape: bf16[128,128], index: 3, kind: input, shape index: {}]
  %s4 = inlined_call_operand.vmem [shape: f32[1,128], index: 4, kind: input, shape index: {}]
  %s5 = inlined_call_operand.hbm [shape: f32[16,128], index: 5, kind: output, shape index: {}]
  %s6 = sld [smem:[#allocation0]]
  $region42: #{tpu_custom_call.1} parent=0
    _
  %s8 = ssub.s32 1, %s6
  %s9 = scalar_select 0, %s8, %s6
  $region1: #{tpu_custom_call.1} parent=0
    #allocation2 [shape = 'u8[4096]{0}', space=vmem, size = 0x1000, scoped, tag = 'input window, operand 0, single buffered']
    #allocation3 [shape = 's32[1]{0}', space=sflag, size = 0x4, scoped, tag = 'scoped memory for tpu_custom_call.1']
    #allocation4 [shape = 's32[1]{0}', space=sflag, size = 0x4, scoped, tag = 'scoped memory for tpu_custom_call.1']
    #allocation5 [shape = 'u8[32768]{0}', space=vmem, size = 0x8000, scoped, tag = 'input window, operand 1, single buffered']
    #allocation6 [shape = 's32[1]{0}', space=sflag, size = 0x4, scoped, tag = 'scoped memory for tpu_custom_call.1']
    #allocation7 [shape = 'u8[32768]{0}', space=vmem, size = 0x8000, scoped, tag = 'input window, operand 3, single buffered']
    #allocation8 [shape = 'u8[8192]{0}', space=vmem, size = 0x2000, scoped, tag = 'output window, operand 0, single buffered']
    %10 = vsyncpa [#allocation3], 0
    %11 = vsyncpa [#allocation6], 0
    %12 = vsyncpa [#allocation4], 0
    // Predicated region
    $region2: #{tpu_custom_call.1} parent=1 // pred_check
      _
    $region3: #{tpu_custom_call.1} parent=1 // pred_check_branch
      %14 = sbr.rel (0) target = $region5
    $region4: #{tpu_custom_call.1} parent=1 // pred_region
      %s16 = ssub.s32 128, 128
      %17 = vsyncadd [#allocation3], %s16
      %s18 = sshll.u32 [#allocation2], 4
      %s19 = int_to_ptr.vmem [resolvable:$true] %s18
      %24 = dma.hbm_to_vmem [thread:$0]  %s0, 128, %s19, [#allocation3], 64, 64, 4
    $region5: #{tpu_custom_call.1} parent=1 // pred_fallthru
      _
    // Predicated region
    $region6: #{tpu_custom_call.1} parent=1 // pred_check
      _
    $region7: #{tpu_custom_call.1} parent=1 // pred_check_branch
      %26 = sbr.rel (0) target = $region9
    $region8: #{tpu_custom_call.1} parent=1 // pred_region
      %s28 = ssub.s32 1024, 1024
      %29 = vsyncadd [#allocation6], %s28
      %s30 = sshll.u32 [#allocation5], 4
      %s31 = int_to_ptr.vmem [resolvable:$true] %s30
      %36 = dma.hbm_to_vmem [thread:$0]  %s1, 1024, %s31, [#allocation6], 64, 64, 4
    $region9: #{tpu_custom_call.1} parent=1 // pred_fallthru
      _
    // Predicated region
    $region10: #{tpu_custom_call.1} parent=1 // pred_check
      _
    $region11: #{tpu_custom_call.1} parent=1 // pred_check_branch
      %38 = sbr.rel (0) target = $region13
    $region12: #{tpu_custom_call.1} parent=1 // pred_region
      _
    $region13: #{tpu_custom_call.1} parent=1 // pred_fallthru
      _
    // Predicated region
    $region14: #{tpu_custom_call.1} parent=1 // pred_check
      _
    $region15: #{tpu_custom_call.1} parent=1 // pred_check_branch
      %40 = sbr.rel (0) target = $region17
    $region16: #{tpu_custom_call.1} parent=1 // pred_region
      %s42 = ssub.s32 1024, 1024
      %43 = vsyncadd [#allocation6], %s42
      %s44 = sshll.u32 [#allocation7], 4
      %s45 = int_to_ptr.vmem [resolvable:$true] %s44
      %50 = dma.hbm_to_vmem [thread:$0]  %s3, 1024, %s45, [#allocation6], 64, 64, 4
    $region17: #{tpu_custom_call.1} parent=1 // pred_fallthru
      _
    // Predicated region
    $region18: #{tpu_custom_call.1} parent=1 // pred_check
      _
    $region19: #{tpu_custom_call.1} parent=1 // pred_check_branch
      %52 = sbr.rel (0) target = $region21
    $region20: #{tpu_custom_call.1} parent=1 // pred_region
      _
    $region21: #{tpu_custom_call.1} parent=1 // pred_fallthru
      _
    // Predicated region
    $region22: #{tpu_custom_call.1} parent=1 // pred_check
      _
    $region23: #{tpu_custom_call.1} parent=1 // pred_check_branch
      %54 = sbr.rel (0) target = $region25
    $region24: #{tpu_custom_call.1} parent=1 // pred_region
      %55 = dma.done [#allocation3], 128
    $region25: #{tpu_custom_call.1} parent=1 // pred_fallthru
      _
    // Predicated region
    $region26: #{tpu_custom_call.1} parent=1 // pred_check
      _
    $region27: #{tpu_custom_call.1} parent=1 // pred_check_branch
      %57 = sbr.rel (0) target = $region29
    $region28: #{tpu_custom_call.1} parent=1 // pred_region
      %58 = dma.done [#allocation6], 1024
    $region29: #{tpu_custom_call.1} parent=1 // pred_fallthru
      _
    // Predicated region
    $region30: #{tpu_custom_call.1} parent=1 // pred_check
      _
    $region31: #{tpu_custom_call.1} parent=1 // pred_check_branch
      %60 = sbr.rel (0) target = $region33
    $region32: #{tpu_custom_call.1} parent=1 // pred_region
      %61 = dma.done [#allocation6], 1024
    $region33: #{tpu_custom_call.1} parent=1 // pred_fallthru
      _
    %v63 = vld [vmem:[#allocation2] sm:$0xf]
    %v64 = vld [vmem:[#allocation2 + $0x4] sm:$0xf]
    %v65 = vld [vmem:[#allocation5] sm:$0xf]
    %v66 = vld [vmem:[#allocation5 + $0x4] sm:$0xf]
    %v67 = vld [vmem:[#allocation5 + $0x8] sm:$0xf]
    %v68 = vld [vmem:[#allocation5 + $0xc] sm:$0xf]
    %v69 = vld [vmem:[#allocation5 + $0x10] sm:$0xf]
    %v70 = vld [vmem:[#allocation5 + $0x14] sm:$0xf]
    %v71 = vld [vmem:[#allocation5 + $0x18] sm:$0xf]
    %v72 = vld [vmem:[#allocation5 + $0x1c] sm:$0xf]
    %v73 = vld [vmem:[#allocation5 + $0x20] sm:$0xf]
    %v74 = vld [vmem:[#allocation5 + $0x24] sm:$0xf]
    %v75 = vld [vmem:[#allocation5 + $0x28] sm:$0xf]
    %v76 = vld [vmem:[#allocation5 + $0x2c] sm:$0xf]
    %v77 = vld [vmem:[#allocation5 + $0x30] sm:$0xf]
    %v78 = vld [vmem:[#allocation5 + $0x34] sm:$0xf]
    %v79 = vld [vmem:[#allocation5 + $0x38] sm:$0xf]
    %v80 = vld [vmem:[#allocation5 + $0x3c] sm:$0xf]
    %v81 = vld [vmem:[%s2] sm:$0x1]
    %v83 = vlaneseq
    %v84 = vshrl.u32 %v83, 7
    %v85 = vsub.s32 0, %v84
    %v86 = vrot.slane %v81, %v85
    %v90 = vunpack.c.l.b16 %v63
    %v91 = vunpack.c.l.b16 %v64
    %v92 = vpack.c.b16 %v91, %v90
    %v110 = vunpack.c.l.b16 %v65
    %v111 = vunpack.c.l.b16 %v66
    %v112 = vunpack.c.l.b16 %v67
    %v113 = vunpack.c.l.b16 %v68
    %v114 = vunpack.c.l.b16 %v69
    %v115 = vunpack.c.l.b16 %v70
    %v116 = vunpack.c.l.b16 %v71
    %v117 = vunpack.c.l.b16 %v72
    %v118 = vunpack.c.l.b16 %v73
    %v119 = vunpack.c.l.b16 %v74
    %v120 = vunpack.c.l.b16 %v75
    %v121 = vunpack.c.l.b16 %v76
    %v122 = vunpack.c.l.b16 %v77
    %v123 = vunpack.c.l.b16 %v78
    %v124 = vunpack.c.l.b16 %v79
    %v125 = vunpack.c.l.b16 %v80
    %v126 = vpack.c.b16 %v111, %v110
    %v127 = vpack.c.b16 %v113, %v112
    %v128 = vpack.c.b16 %v115, %v114
    %v129 = vpack.c.b16 %v117, %v116
    %v130 = vpack.c.b16 %v119, %v118
    %v131 = vpack.c.b16 %v121, %v120
    %v132 = vpack.c.b16 %v123, %v122
    %v133 = vpack.c.b16 %v125, %v124
    %142 = vmatprep.subr.bf16.mxu0 0
    %143 = vmatpush1.bf16.msra.mxu0 %v126
    %144 = vmatprep.subr.bf16.mxu0 0
    %145 = vmatpush1.bf16.msra.mxu0 %v127
    %146 = vmatprep.subr.bf16.mxu0 0
    %147 = vmatpush1.bf16.msra.mxu0 %v128
    %148 = vmatprep.subr.bf16.mxu0 0
    %149 = vmatpush1.bf16.msra.mxu0 %v129
    %150 = vmatprep.subr.bf16.mxu0 0
    %151 = vmatpush1.bf16.msra.mxu0 %v130
    %152 = vmatprep.subr.bf16.mxu0 0
    %153 = vmatpush1.bf16.msra.mxu0 %v131
    %154 = vmatprep.subr.bf16.mxu0 0
    %155 = vmatpush1.bf16.msra.mxu0 %v132
    %156 = vmatprep.subr.bf16.mxu0 0
    %157 = vmatpush1.bf16.msra.mxu0 %v133
    %158 = vmatprep.subr.bf16.mxu0 0
    %159 = vmatpush1.bf16.msra.mxu0 0
    %160 = vmatprep.subr.bf16.mxu0 0
    %161 = vmatpush1.bf16.msra.mxu0 0
    %162 = vmatprep.subr.bf16.mxu0 0
    %163 = vmatpush1.bf16.msra.mxu0 0
    %164 = vmatprep.subr.bf16.mxu0 0
    %165 = vmatpush1.bf16.msra.mxu0 0
    %166 = vmatprep.subr.bf16.mxu0 0
    %167 = vmatpush1.bf16.msra.mxu0 0
    %168 = vmatprep.subr.bf16.mxu0 0
    %169 = vmatpush1.bf16.msra.mxu0 0
    %170 = vmatprep.subr.bf16.mxu0 0
    %171 = vmatpush1.bf16.msra.mxu0 0
    %172 = vmatprep.subr.bf16.mxu0 0
    %173 = vmatpush1.bf16.msra.mxu0 0
    %174 = vmatprep.mubr.bf16.mxu0 0
    %175 = vmatmul.mubr.bf16.gmra.mrb[0].mxu0 %v92
    %v176 = vpop.f32.mrb[0].mxu0
    %v177 = vadd.f32 %v86, %v176
    %v178 = vpop.f32.mrb[0].mxu0
    %v179 = vpop.f32.mrb[0].mxu0
    %v180 = vadd.f32 %v86, %v179
    %v181 = vpop.f32.mrb[0].mxu0
    %182 = vdwg.mxu0
    %v183 = vpack.c.bf16 %v180, %v177
    %v184 = vld [vmem:[#allocation7] sm:$0xf]
    %v185 = vld [vmem:[#allocation7 + $0x4] sm:$0xf]
    %v186 = vld [vmem:[#allocation7 + $0x8] sm:$0xf]
    %v187 = vld [vmem:[#allocation7 + $0xc] sm:$0xf]
    %v188 = vld [vmem:[#allocation7 + $0x10] sm:$0xf]
    %v189 = vld [vmem:[#allocation7 + $0x14] sm:$0xf]
    %v190 = vld [vmem:[#allocation7 + $0x18] sm:$0xf]
    %v191 = vld [vmem:[#allocation7 + $0x1c] sm:$0xf]
    %v192 = vld [vmem:[#allocation7 + $0x20] sm:$0xf]
    %v193 = vld [vmem:[#allocation7 + $0x24] sm:$0xf]
    %v194 = vld [vmem:[#allocation7 + $0x28] sm:$0xf]
    %v195 = vld [vmem:[#allocation7 + $0x2c] sm:$0xf]
    %v196 = vld [vmem:[#allocation7 + $0x30] sm:$0xf]
    %v197 = vld [vmem:[#allocation7 + $0x34] sm:$0xf]
    %v198 = vld [vmem:[#allocation7 + $0x38] sm:$0xf]
    %v199 = vld [vmem:[#allocation7 + $0x3c] sm:$0xf]
    %v200 = vld [vmem:[%s4] sm:$0x1]
    %v202 = vlaneseq
    %v203 = vshrl.u32 %v202, 7
    %v204 = vsub.s32 0, %v203
    %v205 = vrot.slane %v200, %v204
    %v223 = vunpack.c.l.b16 %v184
    %v224 = vunpack.c.l.b16 %v185
    %v225 = vunpack.c.l.b16 %v186
    %v226 = vunpack.c.l.b16 %v187
    %v227 = vunpack.c.l.b16 %v188
    %v228 = vunpack.c.l.b16 %v189
    %v229 = vunpack.c.l.b16 %v190
    %v230 = vunpack.c.l.b16 %v191
    %v231 = vunpack.c.l.b16 %v192
    %v232 = vunpack.c.l.b16 %v193
    %v233 = vunpack.c.l.b16 %v194
    %v234 = vunpack.c.l.b16 %v195
    %v235 = vunpack.c.l.b16 %v196
    %v236 = vunpack.c.l.b16 %v197
    %v237 = vunpack.c.l.b16 %v198
    %v238 = vunpack.c.l.b16 %v199
    %v239 = vpack.c.b16 %v224, %v223
    %v240 = vpack.c.b16 %v226, %v225
    %v241 = vpack.c.b16 %v228, %v227
    %v242 = vpack.c.b16 %v230, %v229
    %v243 = vpack.c.b16 %v232, %v231
    %v244 = vpack.c.b16 %v234, %v233
    %v245 = vpack.c.b16 %v236, %v235
    %v246 = vpack.c.b16 %v238, %v237
    %255 = vmatprep.subr.bf16.mxu0 0
    %256 = vmatpush1.bf16.msra.mxu0 %v239
    %257 = vmatprep.subr.bf16.mxu0 0
    %258 = vmatpush1.bf16.msra.mxu0 %v240
    %259 = vmatprep.subr.bf16.mxu0 0
    %260 = vmatpush1.bf16.msra.mxu0 %v241
    %261 = vmatprep.subr.bf16.mxu0 0
    %262 = vmatpush1.bf16.msra.mxu0 %v242
    %263 = vmatprep.subr.bf16.mxu0 0
    %264 = vmatpush1.bf16.msra.mxu0 %v243
    %265 = vmatprep.subr.bf16.mxu0 0
    %266 = vmatpush1.bf16.msra.mxu0 %v244
    %267 = vmatprep.subr.bf16.mxu0 0
    %268 = vmatpush1.bf16.msra.mxu0 %v245
    %269 = vmatprep.subr.bf16.mxu0 0
    %270 = vmatpush1.bf16.msra.mxu0 %v246
    %271 = vmatprep.subr.bf16.mxu0 0
    %272 = vmatpush1.bf16.msra.mxu0 0
    %273 = vmatprep.subr.bf16.mxu0 0
    %274 = vmatpush1.bf16.msra.mxu0 0
    %275 = vmatprep.subr.bf16.mxu0 0
    %276 = vmatpush1.bf16.msra.mxu0 0
    %277 = vmatprep.subr.bf16.mxu0 0
    %278 = vmatpush1.bf16.msra.mxu0 0
    %279 = vmatprep.subr.bf16.mxu0 0
    %280 = vmatpush1.bf16.msra.mxu0 0
    %281 = vmatprep.subr.bf16.mxu0 0
    %282 = vmatpush1.bf16.msra.mxu0 0
    %283 = vmatprep.subr.bf16.mxu0 0
    %284 = vmatpush1.bf16.msra.mxu0 0
    %285 = vmatprep.subr.bf16.mxu0 0
    %286 = vmatpush1.bf16.msra.mxu0 0
    %287 = vmatprep.mubr.bf16.mxu0 0
    %288 = vmatmul.mubr.bf16.gmra.mrb[0].mxu0 %v183
    %v289 = vpop.f32.mrb[0].mxu0
    %v290 = vadd.f32 %v205, %v289
    %v291 = vpop.f32.mrb[0].mxu0
    %v292 = vpop.f32.mrb[0].mxu0
    %v293 = vadd.f32 %v205, %v292
    %v294 = vpop.f32.mrb[0].mxu0
    %295 = vdwg.mxu0
    %296 = vmax.xlane.f32.xlu0 %v290
    %v297 = vpop.xlane.xlu0 %296
    %298 = vmax.xlane.f32.xlu0 %v293
    %v299 = vpop.xlane.xlu0 %298
    %v300 = vsub.f32 %v290, %v297
    %v301 = vsub.f32 %v293, %v299
    %v302 = vmul.f32 %v300, 1.442695
    %v303 = vpow.pop %v302
    %v304 = vmul.f32 %v301, 1.442695
    %v305 = vpow.pop %v304
    %306 = vadd.xlane.f32.xlu0 %v303
    %v307 = vpop.xlane.xlu0 %306
    %308 = vadd.xlane.f32.xlu0 %v305
    %v309 = vpop.xlane.xlu0 %308
    %v310 = vrcp.pop %v307
    %v311 = vrcp.pop %v309
    %v312 = vmul.f32 %v307, %v310
    %v313 = vmul.f32 %v309, %v311
    %v314 = vsub.f32 2.0, %v312
    %v315 = vsub.f32 2.0, %v313
    %v316 = vmul.f32 %v310, %v314
    %v317 = vmul.f32 %v311, %v315
    %v318 = vmul.f32 %v303, %v316
    %v319 = vmul.f32 %v305, %v317
    %320 = vst [vmem:[#allocation8] sm:$0xff] %v318
    %321 = vst [vmem:[#allocation8 + $0x8] sm:$0xff] %v319
    // Predicated region
    $region34: #{tpu_custom_call.1} parent=1 // pred_check
      _
    $region35: #{tpu_custom_call.1} parent=1 // pred_check_branch
      %323 = sbr.rel (0) target = $region37
    $region36: #{tpu_custom_call.1} parent=1 // pred_region
      %s325 = ssub.s32 256, 256
      %326 = vsyncadd [#allocation4], %s325
      %s327 = sshll.u32 [#allocation8], 4
      %s328 = int_to_ptr.vmem [resolvable:$true] %s327
      %333 = dma.vmem_to_hbm [thread:$0]  %s328, 256, %s5, [#allocation4], 128, 128, 8
    $region37: #{tpu_custom_call.1} parent=1 // pred_fallthru
      _
    // Predicated region
    $region38: #{tpu_custom_call.1} parent=1 // pred_check
      _
    $region39: #{tpu_custom_call.1} parent=1 // pred_check_branch
      %335 = sbr.rel (0) target = $region41
    $region40: #{tpu_custom_call.1} parent=1 // pred_region
      %336 = dma.done [#allocation4], 256
    $region41: #{tpu_custom_call.1} parent=1 // pred_fallthru
      _
    %337 = vsyncpa [#allocation3], 1
    %338 = vsyncpa [#allocation6], 1
    %339 = vsyncpa [#allocation4], 1

</llo_original>
